<compile_context>
chip_gen: v5e
topology: v5e:2x2
jax: 0.10.0
libtpu: 0.0.40
codegen_flags: <defaults>
</compile_context>

<pallas_src>
import jax
import jax.numpy as jnp
from jax.experimental import pallas as pl
from jax.experimental.pallas import tpu as pltpu

LANE = 128        # lane width: hidden (VMEM-only) feature dim padded to this
SUB = 16          # batch-tile rounding (bf16-safe sublane packing)
TILE_B_MAX = 1024 # max batch rows per grid step (amortizes ~0.35us/step overhead)


def _round_up(n, m):
    return ((n + m - 1) // m) * m


def _pad2d(a, rows, cols):
    r, c = a.shape
    return jnp.pad(a, ((0, rows - r), (0, cols - c)))


def _dqn_kernel(x_ref, w1_ref, b1_ref, w2_ref, b2_ref, w3_ref, b3_ref, o_ref):
    # x arrives unpadded f32; cast to bf16 in VMEM (no extra HBM traffic).
    xb = x_ref[...].astype(jnp.bfloat16)                        # (tile_b, in)
    # fc1 + relu: K = in_size (16), N = 128 (hidden padded to lane width).
    h1 = jnp.dot(xb, w1_ref[...], preferred_element_type=jnp.float32)
    h1 = jnp.maximum(h1 + b1_ref[...], 0.0)                     # f32 elementwise
    # fc2 + relu
    h2 = jnp.dot(h1.astype(jnp.bfloat16), w2_ref[...],
                 preferred_element_type=jnp.float32)
    h2 = jnp.maximum(h2 + b2_ref[...], 0.0)
    # fc3 (no activation): N = out_size (4) -> tiny writeback (32x fewer bytes).
    out = jnp.dot(h2.astype(jnp.bfloat16), w3_ref[...],
                  preferred_element_type=jnp.float32)
    o_ref[...] = (out + b3_ref[...]).astype(o_ref.dtype)


def prepare_dqn_params(w1, b1, w2, b2, w3, b3):
    """One-time pad/cast of weights: hidden dim -> 128 lanes, bf16 matmul
    operands, f32 biases. Call once and reuse for every forward call."""
    in_size, hid = w1.shape
    out_size = w3.shape[1]
    hid_p = _round_up(hid, LANE)
    return (
        _pad2d(w1, in_size, hid_p).astype(jnp.bfloat16),
        _pad2d(b1, 1, hid_p).astype(jnp.float32),
        _pad2d(w2, hid_p, hid_p).astype(jnp.bfloat16),
        _pad2d(b2, 1, hid_p).astype(jnp.float32),
        _pad2d(w3, hid_p, out_size).astype(jnp.bfloat16),
        b3.astype(jnp.float32),
    )


@jax.jit
def dqn_forward(x, prepared):
    """relu(x@w1+b1) -> relu(.@w2+b2) -> .@w3+b3, fused in one Pallas call.

    x is passed unpadded (f32); the output comes back at its exact final shape,
    so there are no wrapper-side pad/slice HBM round trips.
    """
    w1p, b1p, w2p, b2p, w3p, b3p = prepared
    batch, in_size = x.shape
    hid_p = w1p.shape[1]
    out_size = w3p.shape[1]

    # Batch tile: block dims equal to the full array are always legal (tiny
    # batches); otherwise use the largest tile that fits, but split a single
    # giant tile into >=2 grid steps so v7x's two TensorCores both get work.
    if batch <= SUB:
        tile_b = batch
    else:
        b_ceil = _round_up(batch, SUB)
        tile_b = min(TILE_B_MAX, b_ceil)
        if tile_b >= b_ceil:
            tile_b = max(SUB, _round_up(pl.cdiv(b_ceil, 2), SUB))
    grid = (pl.cdiv(batch, tile_b),)

    flops = 2 * batch * (in_size * hid_p + hid_p * hid_p + hid_p * out_size)
    bytes_accessed = (
        batch * in_size * 4                                   # x (f32 in)
        + (w1p.size + w2p.size + w3p.size) * 2                # bf16 weights
        + (b1p.size + b2p.size + b3p.size) * 4                # f32 biases
        + batch * out_size * 4                                # f32 out
    )

    def resident(shape):  # weights/biases: same block every step (VMEM-resident)
        return pl.BlockSpec(shape, lambda i: (0, 0))

    return pl.pallas_call(
        _dqn_kernel,
        out_shape=jax.ShapeDtypeStruct((batch, out_size), jnp.float32),
        grid=grid,
        in_specs=[
            pl.BlockSpec((tile_b, in_size), lambda i: (i, 0)),  # streamed x
            resident((in_size, hid_p)),                         # w1
            resident((1, hid_p)),                               # b1
            resident((hid_p, hid_p)),                           # w2
            resident((1, hid_p)),                               # b2
            resident((hid_p, out_size)),                        # w3
            resident((1, out_size)),                            # b3
        ],
        out_specs=pl.BlockSpec((tile_b, out_size), lambda i: (i, 0)),
        compiler_params=pltpu.CompilerParams(
            dimension_semantics=("parallel",)),
        cost_estimate=pl.CostEstimate(
            flops=flops, transcendentals=0, bytes_accessed=bytes_accessed),
    )(x, w1p, b1p, w2p, b2p, w3p, b3p)


def init_dqn_params(key, input_size, output_size, hidden=64):
    """Deterministic synthetic parameters (PyTorch-like uniform fan-in init)."""
    ks = jax.random.split(key, 6)

    def linear(kw, kb, fan_in, fan_out):
        bound = 1.0 / jnp.sqrt(fan_in)
        w = jax.random.uniform(kw, (fan_in, fan_out), jnp.float32, -bound, bound)
        b = jax.random.uniform(kb, (1, fan_out), jnp.float32, -bound, bound)
        return w, b

    w1, b1 = linear(ks[0], ks[1], input_size, hidden)
    w2, b2 = linear(ks[2], ks[3], hidden, hidden)
    w3, b3 = linear(ks[4], ks[5], hidden, output_size)
    return w1, b1, w2, b2, w3, b3


def dqn_reference(x, w1, b1, w2, b2, w3, b3):
    h1 = jnp.maximum(x @ w1 + b1, 0.0)
    h2 = jnp.maximum(h1 @ w2 + b2, 0.0)
    return h2 @ w3 + b3


if __name__ == "__main__":
    key = jax.random.PRNGKey(0)
    k_params, k_x, k_x2 = jax.random.split(key, 3)

    input_size, output_size = 16, 4
    raw_params = init_dqn_params(k_params, input_size, output_size)
    prepared = prepare_dqn_params(*raw_params)   # one-time pad/cast of weights

    # Small batch (matches module spec): single full-array block.
    batch = 2
    x = jax.random.normal(k_x, (batch, input_size), jnp.float32)
    out = jax.block_until_ready(dqn_forward(x, prepared))
    ref = dqn_reference(x, *raw_params)
    assert out.shape == (batch, output_size)
    # bf16 matmul operands with f32 accumulation -> loosened tolerance.
    assert jnp.allclose(out, ref, atol=3e-2, rtol=3e-2), "mismatch (batch=2)"

    # Larger, non-divisible batch exercises the 2-step grid + masked last block.
    batch2 = 300
    x2 = jax.random.normal(k_x2, (batch2, input_size), jnp.float32)
    out2 = jax.block_until_ready(dqn_forward(x2, prepared))
    ref2 = dqn_reference(x2, *raw_params)
    assert out2.shape == (batch2, output_size)
    assert jnp.allclose(out2, ref2, atol=3e-2, rtol=3e-2), "mismatch (batch=300)"

    print("KERNEL_OK")
</pallas_src>

<mosaic_0001>
module attributes {stable_mosaic.version = 11 : i64} {
  func.func @_dqn_kernel(%arg0: i32, %arg1: memref<2x16xf32, #tpu.memory_space<vmem>>, %arg2: memref<16x128xbf16, #tpu.memory_space<vmem>>, %arg3: memref<1x128xf32, #tpu.memory_space<vmem>>, %arg4: memref<128x128xbf16, #tpu.memory_space<vmem>>, %arg5: memref<1x128xf32, #tpu.memory_space<vmem>>, %arg6: memref<128x4xbf16, #tpu.memory_space<vmem>>, %arg7: memref<1x4xf32, #tpu.memory_space<vmem>>, %arg8: memref<2x4xf32, #tpu.memory_space<vmem>>) attributes {dimension_semantics = [#tpu.dimension_semantics<parallel>], iteration_bounds = array<i64: 1>, scalar_prefetch = 0 : i64, scratch_operands = 0 : i64, tpu.core_type = #tpu.core_type<tc>, window_params = [{transform_indices = @transform_0, window_bounds = array<i64: 2, 16>}, {pipeline_mode = #tpu.pipeline_mode<synchronous>, transform_indices = @transform_1, window_bounds = array<i64: 16, 128>}, {pipeline_mode = #tpu.pipeline_mode<synchronous>, transform_indices = @transform_2, window_bounds = array<i64: 1, 128>}, {pipeline_mode = #tpu.pipeline_mode<synchronous>, transform_indices = @transform_3, window_bounds = array<i64: 128, 128>}, {pipeline_mode = #tpu.pipeline_mode<synchronous>, transform_indices = @transform_4, window_bounds = array<i64: 1, 128>}, {pipeline_mode = #tpu.pipeline_mode<synchronous>, transform_indices = @transform_5, window_bounds = array<i64: 128, 4>}, {pipeline_mode = #tpu.pipeline_mode<synchronous>, transform_indices = @transform_6, window_bounds = array<i64: 1, 4>}, {transform_indices = @transform_7, window_bounds = array<i64: 2, 4>}]} {
    %c0 = arith.constant 0 : index
    %c0_0 = arith.constant 0 : index
    %0 = vector.load %arg1[%c0, %c0_0] : memref<2x16xf32, #tpu.memory_space<vmem>>, vector<2x16xf32>
    %1 = arith.truncf %0 : vector<2x16xf32> to vector<2x16xbf16>
    %c0_1 = arith.constant 0 : index
    %c0_2 = arith.constant 0 : index
    %2 = vector.load %arg2[%c0_1, %c0_2] : memref<16x128xbf16, #tpu.memory_space<vmem>>, vector<16x128xbf16>
    %cst = arith.constant dense<0.000000e+00> : vector<2x128xf32>
    %3 = tpu.matmul %1, %2, %cst {dimension_numbers = #tpu.dot_dimension_numbers<[1], [0], [0], [1], [0, 0, 1, 1], [], []>} : vector<2x16xbf16>, vector<16x128xbf16>, vector<2x128xf32> -> vector<2x128xf32>
    %c0_3 = arith.constant 0 : index
    %c0_4 = arith.constant 0 : index
    %4 = vector.load %arg3[%c0_3, %c0_4] : memref<1x128xf32, #tpu.memory_space<vmem>>, vector<1x128xf32>
    %5 = vector.broadcast %4 : vector<1x128xf32> to vector<2x128xf32>
    %6 = arith.addf %3, %5 : vector<2x128xf32>
    %cst_5 = arith.constant 0.000000e+00 : f32
    %7 = vector.broadcast %cst_5 : f32 to vector<2x128xf32>
    %8 = arith.maximumf %6, %7 : vector<2x128xf32>
    %9 = arith.truncf %8 : vector<2x128xf32> to vector<2x128xbf16>
    %c0_6 = arith.constant 0 : index
    %c0_7 = arith.constant 0 : index
    %10 = vector.load %arg4[%c0_6, %c0_7] : memref<128x128xbf16, #tpu.memory_space<vmem>>, vector<128x128xbf16>
    %cst_8 = arith.constant dense<0.000000e+00> : vector<2x128xf32>
    %11 = tpu.matmul %9, %10, %cst_8 {dimension_numbers = #tpu.dot_dimension_numbers<[1], [0], [0], [1], [0, 0, 1, 1], [], []>} : vector<2x128xbf16>, vector<128x128xbf16>, vector<2x128xf32> -> vector<2x128xf32>
    %c0_9 = arith.constant 0 : index
    %c0_10 = arith.constant 0 : index
    %12 = vector.load %arg5[%c0_9, %c0_10] : memref<1x128xf32, #tpu.memory_space<vmem>>, vector<1x128xf32>
    %13 = vector.broadcast %12 : vector<1x128xf32> to vector<2x128xf32>
    %14 = arith.addf %11, %13 : vector<2x128xf32>
    %cst_11 = arith.constant 0.000000e+00 : f32
    %15 = vector.broadcast %cst_11 : f32 to vector<2x128xf32>
    %16 = arith.maximumf %14, %15 : vector<2x128xf32>
    %17 = arith.truncf %16 : vector<2x128xf32> to vector<2x128xbf16>
    %c0_12 = arith.constant 0 : index
    %c0_13 = arith.constant 0 : index
    %18 = vector.load %arg6[%c0_12, %c0_13] : memref<128x4xbf16, #tpu.memory_space<vmem>>, vector<128x4xbf16>
    %cst_14 = arith.constant dense<0.000000e+00> : vector<2x4xf32>
    %19 = tpu.matmul %17, %18, %cst_14 {dimension_numbers = #tpu.dot_dimension_numbers<[1], [0], [0], [1], [0, 0, 1, 1], [], []>} : vector<2x128xbf16>, vector<128x4xbf16>, vector<2x4xf32> -> vector<2x4xf32>
    %c0_15 = arith.constant 0 : index
    %c0_16 = arith.constant 0 : index
    %20 = vector.load %arg7[%c0_15, %c0_16] : memref<1x4xf32, #tpu.memory_space<vmem>>, vector<1x4xf32>
    %21 = vector.broadcast %20 : vector<1x4xf32> to vector<2x4xf32>
    %22 = arith.addf %19, %21 : vector<2x4xf32>
    %c0_17 = arith.constant 0 : index
    %c0_18 = arith.constant 0 : index
    %23 = vector.load %arg8[%c0_17, %c0_18] : memref<2x4xf32, #tpu.memory_space<vmem>>, vector<2x4xf32>
    tpu.vector_store %arg8[%c0_17, %c0_18], %22 {strides = array<i32>} : memref<2x4xf32, #tpu.memory_space<vmem>>, vector<2x4xf32>,
    return
  }
  func.func @transform_0(%arg0: i32) -> (i32, i32) {
    %c0_i32 = arith.constant 0 : i32
    %c0_i32_0 = arith.constant 0 : i32
    return %arg0, %c0_i32 : i32, i32
  }
  func.func @transform_1(%arg0: i32) -> (i32, i32) {
    %c0_i32 = arith.constant 0 : i32
    %c0_i32_0 = arith.constant 0 : i32
    %c0_i32_1 = arith.constant 0 : i32
    return %c0_i32, %c0_i32_0 : i32, i32
  }
  func.func @transform_2(%arg0: i32) -> (i32, i32) {
    %c0_i32 = arith.constant 0 : i32
    %c0_i32_0 = arith.constant 0 : i32
    %c0_i32_1 = arith.constant 0 : i32
    return %c0_i32, %c0_i32_0 : i32, i32
  }
  func.func @transform_3(%arg0: i32) -> (i32, i32) {
    %c0_i32 = arith.constant 0 : i32
    %c0_i32_0 = arith.constant 0 : i32
    %c0_i32_1 = arith.constant 0 : i32
    return %c0_i32, %c0_i32_0 : i32, i32
  }
  func.func @transform_4(%arg0: i32) -> (i32, i32) {
    %c0_i32 = arith.constant 0 : i32
    %c0_i32_0 = arith.constant 0 : i32
    %c0_i32_1 = arith.constant 0 : i32
    return %c0_i32, %c0_i32_0 : i32, i32
  }
  func.func @transform_5(%arg0: i32) -> (i32, i32) {
    %c0_i32 = arith.constant 0 : i32
    %c0_i32_0 = arith.constant 0 : i32
    %c0_i32_1 = arith.constant 0 : i32
    return %c0_i32, %c0_i32_0 : i32, i32
  }
  func.func @transform_6(%arg0: i32) -> (i32, i32) {
    %c0_i32 = arith.constant 0 : i32
    %c0_i32_0 = arith.constant 0 : i32
    %c0_i32_1 = arith.constant 0 : i32
    return %c0_i32, %c0_i32_0 : i32, i32
  }
  func.func @transform_7(%arg0: i32) -> (i32, i32) {
    %c0_i32 = arith.constant 0 : i32
    %c0_i32_0 = arith.constant 0 : i32
    return %arg0, %c0_i32 : i32, i32
  }
}

</mosaic_0001>

<llo_original>
// kernel: dqn_forward.1
$region0: #{dqn_forward.1}
  #allocation0 [shape = 'u32[]', space=smem, size = 0x4, offset = 0x4, fixed_abs, tag = 'smem constant byte address 0x4 - core index']
  #allocation1 [shape = 'u32[72,128]{1,0:T(1,128)}', space=vmem, size = 0x9000, scoped, tag = 'internal scratch']
  %s0 = inlined_call_operand.vmem [shape: f32[2,16], index: 0, kind: input, shape index: {}]
  %s1 = inlined_call_operand.hbm [shape: bf16[16,128], index: 1, kind: input, shape index: {}]
  %s2 = inlined_call_operand.vmem [shape: f32[1,128], index: 2, kind: input, shape index: {}]
  %s3 = inlined_call_operand.vmem [shape: bf16[128,128], index: 3, kind: input, shape index: {}]
  %s4 = inlined_call_operand.hbm [shape: f32[1,128], index: 4, kind: input, shape index: {}]
  %s5 = inlined_call_operand.vmem [shape: bf16[128,4], index: 5, kind: input, shape index: {}]
  %s6 = inlined_call_operand.vmem [shape: f32[1,4], index: 6, kind: input, shape index: {}]
  %s7 = inlined_call_operand.hbm [shape: f32[2,4], index: 7, kind: output, shape index: {}]
  %s8 = sld [smem:[#allocation0]]
  $region46: #{dqn_forward.1} parent=0
    _
  %s10 = ssub.s32 1, %s8
  %s11 = scalar_select 0, %s10, %s8
  $region1: #{dqn_forward.1} parent=0
    #allocation2 [shape = 'u8[4096]{0}', space=vmem, size = 0x1000, scoped, tag = 'input window, operand 1, single buffered']
    #allocation3 [shape = 's32[1]{0}', space=sflag, size = 0x4, scoped, tag = 'scoped memory for dqn_forward.1']
    #allocation4 [shape = 's32[1]{0}', space=sflag, size = 0x4, scoped, tag = 'scoped memory for dqn_forward.1']
    #allocation5 [shape = 'u8[512]{0}', space=vmem, size = 0x400, scoped, tag = 'input window, operand 4, single buffered']
    #allocation6 [shape = 's32[1]{0}', space=sflag, size = 0x4, scoped, tag = 'scoped memory for dqn_forward.1']
    #allocation7 [shape = 'u8[1024]{0}', space=vmem, size = 0x400, scoped, tag = 'output window, operand 0, single buffered']
    %12 = vsyncpa [#allocation3], 0
    %13 = vsyncpa [#allocation6], 0
    %14 = vsyncpa [#allocation4], 0
    // Predicated region
    $region2: #{dqn_forward.1} parent=1 // pred_check
      _
    $region3: #{dqn_forward.1} parent=1 // pred_check_branch
      %16 = sbr.rel (0) target = $region5
    $region4: #{dqn_forward.1} parent=1 // pred_region
      _
    $region5: #{dqn_forward.1} parent=1 // pred_fallthru
      _
    // Predicated region
    $region6: #{dqn_forward.1} parent=1 // pred_check
      _
    $region7: #{dqn_forward.1} parent=1 // pred_check_branch
      %18 = sbr.rel (0) target = $region9
    $region8: #{dqn_forward.1} parent=1 // pred_region
      %20 = vsyncadd [#allocation3], 0
      %s21 = sshll.u32 %s1, 4
      %s22 = int_to_ptr.hbm [resolvable:$true] %s21
      %s23 = sshll.u32 [#allocation2], 4
      %s24 = int_to_ptr.vmem [resolvable:$true] %s23
      %29 = dma.hbm_to_vmem [thread:$0]  %s22, 128, %s24, [#allocation3], 64, 64, 4
    $region9: #{dqn_forward.1} parent=1 // pred_fallthru
      _
    // Predicated region
    $region10: #{dqn_forward.1} parent=1 // pred_check
      _
    $region11: #{dqn_forward.1} parent=1 // pred_check_branch
      %31 = sbr.rel (0) target = $region13
    $region12: #{dqn_forward.1} parent=1 // pred_region
      _
    $region13: #{dqn_forward.1} parent=1 // pred_fallthru
      _
    // Predicated region
    $region14: #{dqn_forward.1} parent=1 // pred_check
      _
    $region15: #{dqn_forward.1} parent=1 // pred_check_branch
      %33 = sbr.rel (0) target = $region17
    $region16: #{dqn_forward.1} parent=1 // pred_region
      _
    $region17: #{dqn_forward.1} parent=1 // pred_fallthru
      _
    // Predicated region
    $region18: #{dqn_forward.1} parent=1 // pred_check
      _
    $region19: #{dqn_forward.1} parent=1 // pred_check_branch
      %35 = sbr.rel (0) target = $region21
    $region20: #{dqn_forward.1} parent=1 // pred_region
      %37 = vsyncadd [#allocation6], 0
      %s39 = sshll.u32 %s4, 4
      %s40 = int_to_ptr.hbm [resolvable:$true] %s39
      %s41 = sshll.u32 [#allocation5], 4
      %s42 = int_to_ptr.vmem [resolvable:$true] %s41
      %44 = dma.hbm_to_vmem [thread:$0]  %s40, 16, %s42, [#allocation6]
    $region21: #{dqn_forward.1} parent=1 // pred_fallthru
      _
    // Predicated region
    $region22: #{dqn_forward.1} parent=1 // pred_check
      _
    $region23: #{dqn_forward.1} parent=1 // pred_check_branch
      %46 = sbr.rel (0) target = $region25
    $region24: #{dqn_forward.1} parent=1 // pred_region
      _
    $region25: #{dqn_forward.1} parent=1 // pred_fallthru
      _
    // Predicated region
    $region26: #{dqn_forward.1} parent=1 // pred_check
      _
    $region27: #{dqn_forward.1} parent=1 // pred_check_branch
      %48 = sbr.rel (0) target = $region29
    $region28: #{dqn_forward.1} parent=1 // pred_region
      _
    $region29: #{dqn_forward.1} parent=1 // pred_fallthru
      _
    // Predicated region
    $region30: #{dqn_forward.1} parent=1 // pred_check
      _
    $region31: #{dqn_forward.1} parent=1 // pred_check_branch
      %50 = sbr.rel (0) target = $region33
    $region32: #{dqn_forward.1} parent=1 // pred_region
      %52 = dma.done [#allocation3], 128
    $region33: #{dqn_forward.1} parent=1 // pred_fallthru
      _
    // Predicated region
    $region34: #{dqn_forward.1} parent=1 // pred_check
      _
    $region35: #{dqn_forward.1} parent=1 // pred_check_branch
      %54 = sbr.rel (0) target = $region37
    $region36: #{dqn_forward.1} parent=1 // pred_region
      %56 = dma.done [#allocation6], 16
    $region37: #{dqn_forward.1} parent=1 // pred_fallthru
      _
    %v58 = vld [vmem:[%s0] sm:$0x3]
    %v59 = vpack.c.bf16 %v58, %v58
    %v60 = vld [vmem:[#allocation2] sm:$0xf]
    %v61 = vld [vmem:[#allocation2 + $0x4] sm:$0xf]
    %v62 = vld [vmem:[%s2] sm:$0x1]
    %v64 = vperm.slane %v62, 0
    %v68 = vunpack.c.l.b16 %v60
    %v69 = vunpack.c.l.b16 %v61
    %v70 = vpack.c.b16 %v69, %v68
    %vm72 = vcmask 130048
    %v74 = vsel %vm72, %v59, 0
    %76 = vmatpush.bf16.msra.mxu0 0
    %77 = vmatpush.bf16.msra.mxu0 0
    %78 = vmatpush.bf16.msra.mxu0 0
    %79 = vmatpush.bf16.msra.mxu0 0
    %80 = vmatpush.bf16.msra.mxu0 0
    %81 = vmatpush.bf16.msra.mxu0 0
    %82 = vmatpush.bf16.msra.mxu0 0
    %83 = vmatpush.bf16.msra.mxu0 %v70
    %84 = vmatmul.bf16.gmra.mxu0 %v74
    %v85 = vpop.f32.mrf.mxu0
    %v86 = vadd.f32 %v64, %v85
    %v87 = vpop.f32.mrf.mxu0
    %88 = vdwg.mxu0
    %v89 = vmax.f32 %v86, 0.0
    %v90 = vpack.c.bf16 %v89, %v89
    %v91 = vld [vmem:[%s3] sm:$0xf]
    %v92 = vld [vmem:[%s3 + $0x4] sm:$0xf]
    %v93 = vld [vmem:[%s3 + $0x8] sm:$0xf]
    %v94 = vld [vmem:[%s3 + $0xc] sm:$0xf]
    %v95 = vld [vmem:[%s3 + $0x10] sm:$0xf]
    %v96 = vld [vmem:[%s3 + $0x14] sm:$0xf]
    %v97 = vld [vmem:[%s3 + $0x18] sm:$0xf]
    %v98 = vld [vmem:[%s3 + $0x1c] sm:$0xf]
    %v99 = vld [vmem:[%s3 + $0x20] sm:$0xf]
    %v100 = vld [vmem:[%s3 + $0x24] sm:$0xf]
    %v101 = vld [vmem:[%s3 + $0x28] sm:$0xf]
    %v102 = vld [vmem:[%s3 + $0x2c] sm:$0xf]
    %v103 = vld [vmem:[%s3 + $0x30] sm:$0xf]
    %v104 = vld [vmem:[%s3 + $0x34] sm:$0xf]
    %v105 = vld [vmem:[%s3 + $0x38] sm:$0xf]
    %v106 = vld [vmem:[%s3 + $0x3c] sm:$0xf]
    %v107 = vld [vmem:[#allocation5] sm:$0x1]
    %v109 = vperm.slane %v107, 0
    %v127 = vunpack.c.l.b16 %v91
    %v128 = vunpack.c.l.b16 %v92
    %v129 = vunpack.c.l.b16 %v93
    %v130 = vunpack.c.l.b16 %v94
    %v131 = vunpack.c.l.b16 %v95
    %v132 = vunpack.c.l.b16 %v96
    %v133 = vunpack.c.l.b16 %v97
    %v134 = vunpack.c.l.b16 %v98
    %v135 = vunpack.c.l.b16 %v99
    %v136 = vunpack.c.l.b16 %v100
    %v137 = vunpack.c.l.b16 %v101
    %v138 = vunpack.c.l.b16 %v102
    %v139 = vunpack.c.l.b16 %v103
    %v140 = vunpack.c.l.b16 %v104
    %v141 = vunpack.c.l.b16 %v105
    %v142 = vunpack.c.l.b16 %v106
    %v143 = vpack.c.b16 %v128, %v127
    %v144 = vpack.c.b16 %v130, %v129
    %v145 = vpack.c.b16 %v132, %v131
    %v146 = vpack.c.b16 %v134, %v133
    %v147 = vpack.c.b16 %v136, %v135
    %v148 = vpack.c.b16 %v138, %v137
    %v149 = vpack.c.b16 %v140, %v139
    %v150 = vpack.c.b16 %v142, %v141
    %159 = vmatpush.bf16.msra.mxu0 %v150
    %160 = vmatpush.bf16.msra.mxu0 %v149
    %161 = vmatpush.bf16.msra.mxu0 %v148
    %162 = vmatpush.bf16.msra.mxu0 %v147
    %163 = vmatpush.bf16.msra.mxu0 %v146
    %164 = vmatpush.bf16.msra.mxu0 %v145
    %165 = vmatpush.bf16.msra.mxu0 %v144
    %166 = vmatpush.bf16.msra.mxu0 %v143
    %167 = vmatmul.bf16.gmra.mxu0 %v90
    %v168 = vpop.f32.mrf.mxu0
    %v169 = vadd.f32 %v109, %v168
    %v170 = vpop.f32.mrf.mxu0
    %171 = vdwg.mxu0
    %v172 = vmax.f32 %v169, 0.0
    %v173 = vpack.c.bf16 %v172, %v172
    %v174 = vld [vmem:[%s5] sm:$0xf]
    %v175 = vld [vmem:[%s5 + $0x4] sm:$0xf]
    %v176 = vld [vmem:[%s5 + $0x8] sm:$0xf]
    %v177 = vld [vmem:[%s5 + $0xc] sm:$0xf]
    %v178 = vld [vmem:[%s5 + $0x10] sm:$0xf]
    %v179 = vld [vmem:[%s5 + $0x14] sm:$0xf]
    %v180 = vld [vmem:[%s5 + $0x18] sm:$0xf]
    %v181 = vld [vmem:[%s5 + $0x1c] sm:$0xf]
    %v182 = vld [vmem:[%s5 + $0x20] sm:$0xf]
    %v183 = vld [vmem:[%s5 + $0x24] sm:$0xf]
    %v184 = vld [vmem:[%s5 + $0x28] sm:$0xf]
    %v185 = vld [vmem:[%s5 + $0x2c] sm:$0xf]
    %v186 = vld [vmem:[%s5 + $0x30] sm:$0xf]
    %v187 = vld [vmem:[%s5 + $0x34] sm:$0xf]
    %v188 = vld [vmem:[%s5 + $0x38] sm:$0xf]
    %v189 = vld [vmem:[%s5 + $0x3c] sm:$0xf]
    %v190 = vld [vmem:[%s6] sm:$0x1]
    %v192 = vperm.slane %v190, 0
    %v210 = vunpack.c.l.b16 %v174
    %v211 = vunpack.c.l.b16 %v175
    %v212 = vunpack.c.l.b16 %v176
    %v213 = vunpack.c.l.b16 %v177
    %v214 = vunpack.c.l.b16 %v178
    %v215 = vunpack.c.l.b16 %v179
    %v216 = vunpack.c.l.b16 %v180
    %v217 = vunpack.c.l.b16 %v181
    %v218 = vunpack.c.l.b16 %v182
    %v219 = vunpack.c.l.b16 %v183
    %v220 = vunpack.c.l.b16 %v184
    %v221 = vunpack.c.l.b16 %v185
    %v222 = vunpack.c.l.b16 %v186
    %v223 = vunpack.c.l.b16 %v187
    %v224 = vunpack.c.l.b16 %v188
    %v225 = vunpack.c.l.b16 %v189
    %v226 = vpack.c.b16 %v211, %v210
    %v227 = vpack.c.b16 %v213, %v212
    %v228 = vpack.c.b16 %v215, %v214
    %v229 = vpack.c.b16 %v217, %v216
    %v230 = vpack.c.b16 %v219, %v218
    %v231 = vpack.c.b16 %v221, %v220
    %v232 = vpack.c.b16 %v223, %v222
    %v233 = vpack.c.b16 %v225, %v224
    %242 = vmatpush.bf16.msra.mxu0 %v233
    %243 = vmatpush.bf16.msra.mxu0 %v232
    %244 = vmatpush.bf16.msra.mxu0 %v231
    %245 = vmatpush.bf16.msra.mxu0 %v230
    %246 = vmatpush.bf16.msra.mxu0 %v229
    %247 = vmatpush.bf16.msra.mxu0 %v228
    %248 = vmatpush.bf16.msra.mxu0 %v227
    %249 = vmatpush.bf16.msra.mxu0 %v226
    %250 = vmatmul.bf16.gmra.mxu0 %v173
    %v251 = vpop.f32.mrf.mxu0
    %v252 = vadd.f32 %v192, %v251
    %v253 = vpop.f32.mrf.mxu0
    %254 = vdwg.mxu0
    %vm255 = vcmask 25600
    %256 = vst.msk [vmem:[#allocation7] sm:$0x3] %vm255, %v252
    // Predicated region
    $region38: #{dqn_forward.1} parent=1 // pred_check
      _
    $region39: #{dqn_forward.1} parent=1 // pred_check_branch
      %258 = sbr.rel (0) target = $region41
    $region40: #{dqn_forward.1} parent=1 // pred_region
      %260 = vsyncadd [#allocation4], 0
      %s262 = sshll.u32 [#allocation7], 4
      %s263 = int_to_ptr.vmem [resolvable:$true] %s262
      %s264 = sshll.u32 %s7, 4
      %s265 = int_to_ptr.hbm [resolvable:$true] %s264
      %267 = dma.vmem_to_hbm [thread:$0]  %s263, 32, %s265, [#allocation4]
    $region41: #{dqn_forward.1} parent=1 // pred_fallthru
      _
    // Predicated region
    $region42: #{dqn_forward.1} parent=1 // pred_check
      _
    $region43: #{dqn_forward.1} parent=1 // pred_check_branch
      %269 = sbr.rel (0) target = $region45
    $region44: #{dqn_forward.1} parent=1 // pred_region
      %271 = dma.done [#allocation4], 32
    $region45: #{dqn_forward.1} parent=1 // pred_fallthru
      _
    %272 = vsyncpa [#allocation3], 1
    %273 = vsyncpa [#allocation6], 1
    %274 = vsyncpa [#allocation4], 1

</llo_original>
